<compile_context>
chip_gen: v5e
topology: v5e:2x2
jax: 0.10.0
libtpu: 0.0.40
codegen_flags: <defaults>
</compile_context>

<pallas_src>
from types import SimpleNamespace

import jax
import jax.numpy as jnp
from jax import lax
from jax.experimental import pallas as pl
from jax.experimental.pallas import tpu as pltpu

_SMEM = pltpu.MemorySpace.SMEM

_VMEM_BLOCK_BUDGET = 12 * 1024 * 1024   # bytes for all double-buffered input blocks
_STATIC_UNROLL_MAX = 64                 # static MAC unroll limit (chunks of 8 sublanes)


def _round_up(x, m):
    return (x + m - 1) // m * m


def _padded_feature_dim(d):
    """Lane-pad D so the (N, S, 128) repack is legal.  No-op for typical 3*R*R."""
    d128 = _round_up(d, 128)
    s = d128 // 128
    if s > 8 and s % 8:
        # rare ragged case: pad so S is a multiple of 8
        return _round_up(d128, 1024)
    return d128


def _plan(s_rows, n, x_itemsize, n_streams):
    """Pick (ncore, ts, kt) with ncore*kt*ts == s_rows (ts = sublane rows / grid step).

    VMEM accounting per pipeline buffer (dense, no hidden sublane padding):
        x streams: n_streams * n * ts * 128 * x_itemsize
        w        :                  ts * 128 * 4
    double-buffered (x2); keep the total under _VMEM_BLOCK_BUDGET.
    """
    row_bytes = 2 * (n_streams * n * 128 * x_itemsize + 128 * 4)
    cap = max(8, (_VMEM_BLOCK_BUDGET // row_bytes) // 8 * 8)

    if s_rows % 16 == 0:
        # split the reduction across both TensorCores (v7x); sequential elsewhere
        per_core = s_rows // 2
        ts = min(cap, per_core)
        while per_core % ts:
            ts -= 8
        return 2, ts, per_core // ts
    if s_rows % 8 == 0:
        ts = min(cap, s_rows)
        while s_rows % ts:
            ts -= 8
        return 1, ts, s_rows // ts
    # tiny inputs (e.g. 3*16*16/128 = 6 rows): single full-extent block
    return 1, s_rows, 1


def _make_partial_kernel(n, ts, n_streams, acc_rows):
    """Per-sample partial dot products <x[n], w> over this core's D range."""
    one_shot = (acc_rows < 8) or (ts == 8)
    n_chunks = 0 if one_shot else ts // 8   # ts % 8 == 0 here by construction

    def kernel(*refs):
        x_refs = refs[:n_streams]
        w_ref = refs[n_streams]
        out_ref = refs[n_streams + 1]
        accs = refs[n_streams + 2:]
        k = pl.program_id(1)

        @pl.when(k == 0)
        def _init():
            for a in accs:
                a[...] = jnp.zeros_like(a)

        if one_shot:
            w = w_ref[...].astype(jnp.float32)
            for a, xr in zip(accs, x_refs):
                a[...] += xr[...].astype(jnp.float32) * w
        elif n_chunks <= _STATIC_UNROLL_MAX:
            # chunked MAC, 8 sublanes at a time: bounded live vregs, static slices
            for i in range(n_chunks):
                lo = i * 8
                w = w_ref[lo:lo + 8, :].astype(jnp.float32)
                for a, xr in zip(accs, x_refs):
                    a[...] += xr[:, lo:lo + 8, :].astype(jnp.float32) * w
        else:
            def body(i, carry):
                lo = pl.multiple_of(i * 8, 8)
                w = w_ref[pl.ds(lo, 8), :].astype(jnp.float32)
                for a, xr in zip(accs, x_refs):
                    a[...] += xr[:, pl.ds(lo, 8), :].astype(jnp.float32) * w
                return carry
            lax.fori_loop(0, n_chunks, body, 0, unroll=8)

        @pl.when(k == pl.num_programs(1) - 1)
        def _fin():
            for si, a in enumerate(accs):
                for s in range(n):
                    out_ref[0, si * n + s] = jnp.sum(a[s])

    return kernel


def _partial_logits(x_list, w3):
    """x_list: list of (N, S, 128) activation stacks; w3: (S, 128) weights.

    Returns (ncore, n_streams*N) f32 partial <x, w> sums (summed over the core axis
    by the caller).  The tiny loss epilogue lives in the wrapper.
    """
    n, s_rows, _ = x_list[0].shape
    n_streams = len(x_list)
    x_itemsize = jnp.dtype(x_list[0].dtype).itemsize
    ncore, ts, kt = _plan(s_rows, n, x_itemsize, n_streams)
    acc_rows = 8 if ts >= 8 else ts
    out_w = n_streams * n

    x_spec = pl.BlockSpec((n, ts, 128), lambda c, k: (0, c * kt + k, 0))
    w_spec = pl.BlockSpec((ts, 128), lambda c, k: (c * kt + k, 0))
    out_spec = pl.BlockSpec((1, out_w), lambda c, k: (c, 0), memory_space=_SMEM)

    return pl.pallas_call(
        _make_partial_kernel(n, ts, n_streams, acc_rows),
        out_shape=jax.ShapeDtypeStruct((ncore, out_w), jnp.float32),
        grid=(ncore, kt),
        in_specs=[x_spec] * n_streams + [w_spec],
        out_specs=out_spec,
        scratch_shapes=[pltpu.VMEM((n, acc_rows, 128), jnp.float32)] * n_streams,
        compiler_params=pltpu.CompilerParams(
            dimension_semantics=("parallel", "arbitrary"),
            vmem_limit_bytes=32 * 1024 * 1024,
        ),
    )(*x_list, w3)


# ------------------------------ loss functions -------------------------------

def _hinge_loss(fake_pred, real_pred, mode):
    if mode == 'd':
        return (jnp.mean(jax.nn.relu(1.0 + fake_pred))
                + jnp.mean(jax.nn.relu(1.0 - real_pred)))
    return -jnp.mean(fake_pred)


def _logistic_loss(fake_pred, real_pred, mode):
    if mode == 'd':
        return (jnp.mean(jax.nn.softplus(fake_pred))
                + jnp.mean(jax.nn.softplus(-real_pred)))
    return jnp.mean(jax.nn.softplus(-fake_pred))


# --------------------------------- GANLoss -----------------------------------

class GANLoss:
    def __init__(self, opt, disc_loss='logistic', key=None, image_dtype=jnp.bfloat16):
        self.opt = opt
        self.disc_loss = _hinge_loss if disc_loss == 'hinge' else _logistic_loss
        self.image_dtype = image_dtype   # bf16 streaming; f32 accumulation in-kernel

        input_dim = 3
        d = input_dim * opt.img_res * opt.img_res
        self.d = d
        self.d_pad = _padded_feature_dim(d)

        key = jax.random.PRNGKey(0) if key is None else key
        k_w, _ = jax.random.split(key)
        # deterministic synthetic (linear) discriminator parameters
        w = jax.random.normal(k_w, (d,), jnp.float32) / jnp.sqrt(float(d))
        w_pad = jnp.pad(w, (0, self.d_pad - d)) if self.d_pad != d else w
        self.w3 = w_pad.reshape(self.d_pad // 128, 128)   # cached, zero-padded lanes
        self.b = jnp.float32(0.0)
        # R1 term hoisted out of the kernel: for the linear stand-in,
        # mean_n ||grad_x sum(logits)||^2 == ||w||^2, a constant.
        # TODO(synk): with a real StyleDiscriminator this must be a real backward pass.
        self.w_sq = jnp.sum(w * w)

    def _prep(self, img):
        """(N,3,R,R) -> (N, S, 128) bf16, fully lane/sublane-dense for the kernel."""
        n = img.shape[0]
        x = img.reshape(n, -1)
        if x.dtype != self.image_dtype:
            x = x.astype(self.image_dtype)
        d = x.shape[1]
        if d != self.d_pad:
            # TODO(synk): per-call pad copies x through HBM; pre-pad upstream for
            # non-conforming resolutions (no-op for typical power-of-two sizes).
            x = jnp.pad(x, ((0, 0), (0, self.d_pad - d)))
        return x.reshape(n, self.d_pad // 128, 128)

    def __call__(self, inputs, global_step, optimizer_idx):
        real = inputs['norm_real']
        fake = inputs['norm_fake']
        n = real.shape[0]

        if optimizer_idx == 0:
            loss = jnp.float32(0.0)
            log = {}
            if self.opt.lambda_gan > 0:
                parts = _partial_logits([self._prep(fake)], self.w3)
                logits_fake = jnp.sum(parts, axis=0)[:n] + self.b        # (N,)
                g_loss = self.disc_loss(logits_fake, None, mode='g')
                log['loss_train/g_loss'] = g_loss
                loss = loss + g_loss
            return loss, log

        if optimizer_idx == 1:
            xr = self._prep(real)
            xf = self._prep(jax.lax.stop_gradient(fake))                 # .detach().clone()
            parts = _partial_logits([xr, xf], self.w3)                   # (ncore, 2N)
            sums = jnp.sum(parts, axis=0)
            logits_real = sums[:n] + self.b
            logits_fake = sums[n:] + self.b

            disc_loss = self.disc_loss(fake_pred=logits_fake, real_pred=logits_real, mode='d')

            if (global_step % self.opt.d_reg_every == 0) and self.opt.lambda_grad > 0:
                grad_penalty = (self.opt.lambda_grad / 2.0 * self.w_sq
                                * self.opt.d_reg_every)
            else:
                grad_penalty = jnp.float32(0.0)

            d_loss = disc_loss + grad_penalty
            log = {
                'loss_train/disc_loss': disc_loss,
                'loss_train/r1_loss': grad_penalty,
                'loss_train/logits_real': jnp.mean(logits_real),
                'loss_train/logits_fake': jnp.mean(logits_fake),
            }
            return d_loss * self.opt.lambda_gan, log


# ----------------------------------- main ------------------------------------

if __name__ == "__main__":
    key = jax.random.PRNGKey(0)

    # 16x16 exercises the tiny single-block path; 128x128 exercises the
    # chunked-MAC path and the 2-TensorCore "parallel" reduction split.
    for img_res in (16, 128):
        opt = SimpleNamespace(img_res=img_res, lambda_gan=1.0, lambda_grad=10.0,
                              d_reg_every=16)
        k_real, k_fake, k_params, key = jax.random.split(key, 4)
        shape = (2, 3, img_res, img_res)
        # bf16 images: halves HBM streaming traffic (kernel accumulates in f32)
        norm_real = jax.random.normal(k_real, shape, jnp.float32).astype(jnp.bfloat16)
        norm_fake = jax.random.normal(k_fake, shape, jnp.float32).astype(jnp.bfloat16)
        inputs = {'norm_real': norm_real, 'norm_fake': norm_fake}

        gan = GANLoss(opt, disc_loss='logistic', key=k_params)
        g_loss, g_log = gan(inputs, global_step=16, optimizer_idx=0)    # G step
        d_loss, d_log = gan(inputs, global_step=16, optimizer_idx=1)    # D step (+R1)

        gan_h = GANLoss(opt, disc_loss='hinge', key=k_params)
        h_loss, _ = gan_h(inputs, global_step=3, optimizer_idx=1)       # hinge, no R1

        jax.block_until_ready((g_loss, d_loss, h_loss, g_log, d_log))

    print("KERNEL_OK")
</pallas_src>

<mosaic_0001>
module attributes {stable_mosaic.version = 11 : i64} {
  func.func @kernel(%arg0: i32, %arg1: i32, %arg2: memref<2x6x128xbf16, #tpu.memory_space<vmem>>, %arg3: memref<6x128xf32, #tpu.memory_space<vmem>>, %arg4: memref<1x2xf32, #tpu.memory_space<smem>>, %arg5: memref<2x6x128xf32, #tpu.memory_space<vmem>>) attributes {dimension_semantics = [#tpu.dimension_semantics<parallel>, #tpu.dimension_semantics<arbitrary>], iteration_bounds = array<i64: 1, 1>, scalar_prefetch = 0 : i64, scratch_operands = 1 : i64, tpu.core_type = #tpu.core_type<tc>, window_params = [{transform_indices = @transform_0, window_bounds = array<i64: 2, 6, 128>}, {transform_indices = @transform_1, window_bounds = array<i64: 6, 128>}, {transform_indices = @transform_2, window_bounds = array<i64: 1, 2>}]} {
    %c0_i32 = arith.constant 0 : i32
    %0 = arith.cmpi eq, %arg1, %c0_i32 : i32
    %1 = arith.extui %0 : i1 to i32
    %c0_i32_0 = arith.constant 0 : i32
    %2 = arith.cmpi ne, %1, %c0_i32_0 : i32
    scf.if %2 {
      %cst = arith.constant 0.000000e+00 : f32
      %15 = vector.broadcast %cst : f32 to vector<2x6x128xf32>
      %c0_13 = arith.constant 0 : index
      %c0_14 = arith.constant 0 : index
      %c0_15 = arith.constant 0 : index
      %16 = vector.load %arg5[%c0_13, %c0_14, %c0_15] : memref<2x6x128xf32, #tpu.memory_space<vmem>>, vector<2x6x128xf32>
      tpu.vector_store %arg5[%c0_13, %c0_14, %c0_15], %15 {strides = array<i32>} : memref<2x6x128xf32, #tpu.memory_space<vmem>>, vector<2x6x128xf32>,
    } else {
    }
    %c0 = arith.constant 0 : index
    %c0_1 = arith.constant 0 : index
    %3 = vector.load %arg3[%c0, %c0_1] : memref<6x128xf32, #tpu.memory_space<vmem>>, vector<6x128xf32>
    %c0_2 = arith.constant 0 : index
    %c0_3 = arith.constant 0 : index
    %c0_4 = arith.constant 0 : index
    %4 = vector.load %arg5[%c0_2, %c0_3, %c0_4] : memref<2x6x128xf32, #tpu.memory_space<vmem>>, vector<2x6x128xf32>
    %c0_5 = arith.constant 0 : index
    %c0_6 = arith.constant 0 : index
    %c0_7 = arith.constant 0 : index
    %5 = vector.load %arg2[%c0_5, %c0_6, %c0_7] : memref<2x6x128xbf16, #tpu.memory_space<vmem>>, vector<2x6x128xbf16>
    %6 = arith.extf %5 : vector<2x6x128xbf16> to vector<2x6x128xf32>
    %7 = vector.shape_cast %3 : vector<6x128xf32> to vector<1x6x128xf32>
    %8 = vector.broadcast %7 : vector<1x6x128xf32> to vector<2x6x128xf32>
    %9 = arith.mulf %6, %8 : vector<2x6x128xf32>
    %10 = arith.addf %4, %9 : vector<2x6x128xf32>
    %c0_8 = arith.constant 0 : index
    %c0_9 = arith.constant 0 : index
    %c0_10 = arith.constant 0 : index
    %11 = vector.load %arg5[%c0_8, %c0_9, %c0_10] : memref<2x6x128xf32, #tpu.memory_space<vmem>>, vector<2x6x128xf32>
    tpu.vector_store %arg5[%c0_8, %c0_9, %c0_10], %10 {strides = array<i32>} : memref<2x6x128xf32, #tpu.memory_space<vmem>>, vector<2x6x128xf32>,
    %c0_i32_11 = arith.constant 0 : i32
    %12 = arith.cmpi eq, %arg1, %c0_i32_11 : i32
    %13 = arith.extui %12 : i1 to i32
    %c0_i32_12 = arith.constant 0 : i32
    %14 = arith.cmpi ne, %13, %c0_i32_12 : i32
    scf.if %14 {
      %c0_13 = arith.constant 0 : index
      %c0_14 = arith.constant 0 : index
      %c0_15 = arith.constant 0 : index
      %15 = vector.load %arg5[%c0_13, %c0_14, %c0_15] : memref<2x6x128xf32, #tpu.memory_space<vmem>>, vector<1x6x128xf32>
      %16 = vector.shape_cast %15 : vector<1x6x128xf32> to vector<6x128xf32>
      %17 = vector.shape_cast %16 : vector<6x128xf32> to vector<1x6x128xf32>
      %cst = arith.constant dense<0.000000e+00> : vector<1xf32>
      %18 = vector.multi_reduction <add>, %17, %cst [1, 2] : vector<1x6x128xf32> to vector<1xf32>
      %19 = vector.shape_cast %18 : vector<1xf32> to vector<1x1x1xf32>
      %20 = vector.extract %19[0, 0, 0] : f32 from vector<1x1x1xf32>
      %c0_16 = arith.constant 0 : index
      %c0_17 = arith.constant 0 : index
      %21 = memref.load %arg4[%c0_16, %c0_17] : memref<1x2xf32, #tpu.memory_space<smem>>
      memref.store %20, %arg4[%c0_16, %c0_17] : memref<1x2xf32, #tpu.memory_space<smem>>
      %c1 = arith.constant 1 : index
      %c0_18 = arith.constant 0 : index
      %c0_19 = arith.constant 0 : index
      %22 = vector.load %arg5[%c1, %c0_18, %c0_19] : memref<2x6x128xf32, #tpu.memory_space<vmem>>, vector<1x6x128xf32>
      %23 = vector.shape_cast %22 : vector<1x6x128xf32> to vector<6x128xf32>
      %24 = vector.shape_cast %23 : vector<6x128xf32> to vector<1x6x128xf32>
      %cst_20 = arith.constant dense<0.000000e+00> : vector<1xf32>
      %25 = vector.multi_reduction <add>, %24, %cst_20 [1, 2] : vector<1x6x128xf32> to vector<1xf32>
      %26 = vector.shape_cast %25 : vector<1xf32> to vector<1x1x1xf32>
      %27 = vector.extract %26[0, 0, 0] : f32 from vector<1x1x1xf32>
      %c0_21 = arith.constant 0 : index
      %c1_22 = arith.constant 1 : index
      %28 = memref.load %arg4[%c0_21, %c1_22] : memref<1x2xf32, #tpu.memory_space<smem>>
      memref.store %27, %arg4[%c0_21, %c1_22] : memref<1x2xf32, #tpu.memory_space<smem>>
    } else {
    }
    return
  }
  func.func @transform_0(%arg0: i32, %arg1: i32) -> (i32, i32, i32) {
    %c1_i32 = arith.constant 1 : i32
    %0 = arith.muli %arg0, %c1_i32 : i32
    %1 = arith.addi %0, %arg1 : i32
    %c0_i32 = arith.constant 0 : i32
    %c0_i32_0 = arith.constant 0 : i32
    %c0_i32_1 = arith.constant 0 : i32
    return %c0_i32, %1, %c0_i32_0 : i32, i32, i32
  }
  func.func @transform_1(%arg0: i32, %arg1: i32) -> (i32, i32) {
    %c1_i32 = arith.constant 1 : i32
    %0 = arith.muli %arg0, %c1_i32 : i32
    %1 = arith.addi %0, %arg1 : i32
    %c0_i32 = arith.constant 0 : i32
    %c0_i32_0 = arith.constant 0 : i32
    return %1, %c0_i32 : i32, i32
  }
  func.func @transform_2(%arg0: i32, %arg1: i32) -> (i32, i32) {
    %c0_i32 = arith.constant 0 : i32
    %c0_i32_0 = arith.constant 0 : i32
    return %arg0, %c0_i32 : i32, i32
  }
}

</mosaic_0001>

<llo_original>
// kernel: tpu_custom_call.1
$region0: #{tpu_custom_call.1}
  #allocation0 [shape = 'u32[]', space=smem, size = 0x4, offset = 0x4, fixed_abs, tag = 'smem constant byte address 0x4 - core index']
  #allocation1 [shape = 'u32[72,128]{1,0:T(1,128)}', space=vmem, size = 0x9000, scoped, tag = 'internal scratch']
  #allocation2 [shape = 'f32[2,6,128]{2,1,0:T(8,128)}', space=vmem, size = 0x2000, scoped, tag = 'scratch operand']
  %s0 = inlined_call_operand.vmem [shape: bf16[2,6,128], index: 0, kind: input, shape index: {}]
  %s1 = inlined_call_operand.vmem [shape: f32[6,128], index: 1, kind: input, shape index: {}]
  %s2 = inlined_call_operand.hbm [shape: f32[1,2], index: 2, kind: output, shape index: {}]
  %s3 = sld [smem:[#allocation0]]
  $region26: #{tpu_custom_call.1} parent=0
    _
  %s5 = ssub.s32 1, %s3
  %s6 = scalar_select 0, %s5, %s3
  $region1: #{tpu_custom_call.1} parent=0
    #allocation3 [shape = 'u8[512]{0}', space=smem, size = 0x200, scoped, tag = 'output window, operand 0, single buffered']
    #allocation4 [shape = 's32[1]{0}', space=sflag, size = 0x4, scoped, tag = 'scoped memory for tpu_custom_call.1']
    %7 = vsyncpa [#allocation4], 0
    // Predicated region
    $region2: #{tpu_custom_call.1} parent=1 // pred_check
      _
    $region3: #{tpu_custom_call.1} parent=1 // pred_check_branch
      %9 = sbr.rel (0) target = $region5
    $region4: #{tpu_custom_call.1} parent=1 // pred_region
      %s10 = sadd.s32 0, 0
      %p11 = scmp.lt.s32.totalorder %s10, 0
      %s12 = scalar_select %p11, %s10, 0
      %s13 = smul.addr %s12, 4
      %s14 = scalar_lea.vmem %s0, %s13
      %s15 = sadd.s32 0, 0
    $region5: #{tpu_custom_call.1} parent=1 // pred_fallthru
      _
    // Predicated region
    $region6: #{tpu_custom_call.1} parent=1 // pred_check
      _
    $region7: #{tpu_custom_call.1} parent=1 // pred_check_branch
      %17 = sbr.rel (0) target = $region9
    $region8: #{tpu_custom_call.1} parent=1 // pred_region
      %s18 = sadd.s32 0, 0
      %p19 = scmp.lt.s32.totalorder %s18, 0
      %s20 = scalar_select %p19, %s18, 0
      %s21 = smul.addr %s20, 8
      %s22 = scalar_lea.vmem %s1, %s21
      %s23 = sadd.s32 0, 0
    $region9: #{tpu_custom_call.1} parent=1 // pred_fallthru
      _
    %s24 = sadd.s32 0, 0
    %p25 = scmp.lt.s32.totalorder %s24, 0
    %s26 = scalar_select %p25, %s24, 0
    %s27 = smul.addr %s26, 4
    %s28 = scalar_lea.vmem %s0, %s27
    %s29 = sadd.s32 0, 0
    %p30 = scmp.lt.s32.totalorder %s29, 0
    %s31 = scalar_select %p30, %s29, 0
    %s32 = smul.addr %s31, 8
    %s33 = scalar_lea.vmem %s1, %s32
    %s34 = sadd.s32 0, 0
    %p35 = scmp.lt.s32.totalorder %s34, 0
    %s36 = scalar_select %p35, %s34, 0
    %s37 = smul.addr %s36, 4
    %s38 = scalar_lea.vmem %s0, %s37
    %s39 = sadd.s32 0, 0
    %s40 = sadd.s32 0, 0
    %p41 = scmp.lt.s32.totalorder %s40, 0
    %s42 = scalar_select %p41, %s40, 0
    %s43 = smul.addr %s42, 8
    %s44 = scalar_lea.vmem %s1, %s43
    %s45 = sadd.s32 0, 0
    %p46 = scmp.eq.s32.totalorder 0, 0
    // Predicated region
    $region10: #{tpu_custom_call.1} parent=1 // pred_check
      %p47 = pneg %p46
    $region11: #{tpu_custom_call.1} parent=1 // pred_check_branch
      %49 = sbr.rel (%p47) target = $region13
    $region12: #{tpu_custom_call.1} parent=1 // pred_region
      %50 = vst [vmem:[#allocation2] sm:$0x3f] 0.0
      %51 = vst [vmem:[#allocation2 + $0x8] sm:$0x3f] 0.0
    $region13: #{tpu_custom_call.1} parent=1 // pred_fallthru
      _
    %v52 = vld [vmem:[%s44] sm:$0x3f]
    %v53 = vld [vmem:[#allocation2] sm:$0x3f]
    %v54 = vld [vmem:[#allocation2 + $0x8] sm:$0x3f]
    %v55 = vld [vmem:[%s38] sm:$0x7]
    %v56 = vld [vmem:[%s38 + $0x4] sm:$0x7]
    %v57 = vunpack.c.l.bf16 %v55
    %v58 = vunpack.c.l.bf16 %v56
    %v59 = vmul.f32 %v57, %v52
    %v60 = vmul.f32 %v58, %v52
    %v61 = vadd.f32 %v53, %v59
    %v62 = vadd.f32 %v54, %v60
    %63 = vst [vmem:[#allocation2] sm:$0x3f] %v61
    %64 = vst [vmem:[#allocation2 + $0x8] sm:$0x3f] %v62
    // Predicated region
    $region14: #{tpu_custom_call.1} parent=1 // pred_check
      %p65 = pneg %p46
    $region15: #{tpu_custom_call.1} parent=1 // pred_check_branch
      %67 = sbr.rel (%p65) target = $region17
    $region16: #{tpu_custom_call.1} parent=1 // pred_region
      %v68 = vld [vmem:[#allocation2] sm:$0x3f]
      %vm69 = vcmask 1045504
      %v70 = vsel %vm69, %v68, 0.0
      %71 = vadd.xlane.f32.xlu0 %v70
      %v72 = vpop.xlane.xlu0 %71
      %v73 = vrot.slane %v72, 4
      %v74 = vadd.f32 %v72, %v73
      %v75 = vrot.slane %v74, 2
      %v76 = vadd.f32 %v74, %v75
      %v77 = vrot.slane %v76, 1
      %v78 = vadd.f32 %v76, %v77
      %s79 = vtos %v78
      %s80 = scalar_lea.smem [#allocation3], 0
      %81 = sst [smem:[%s80]] %s79
      %s82 = scalar_lea.vmem [#allocation2], 8
      %v83 = vld [vmem:[%s82] sm:$0x3f]
      %v84 = vsel %vm69, %v83, 0.0
      %85 = vadd.xlane.f32.xlu0 %v84
      %v86 = vpop.xlane.xlu0 %85
      %v87 = vrot.slane %v86, 4
      %v88 = vadd.f32 %v86, %v87
      %v89 = vrot.slane %v88, 2
      %v90 = vadd.f32 %v88, %v89
      %v91 = vrot.slane %v90, 1
      %v92 = vadd.f32 %v90, %v91
      %s93 = vtos %v92
      %s94 = scalar_lea.smem [#allocation3], 1
      %95 = sst [smem:[%s94]] %s93
    $region17: #{tpu_custom_call.1} parent=1 // pred_fallthru
      _
    // Predicated region
    $region18: #{tpu_custom_call.1} parent=1 // pred_check
      _
    $region19: #{tpu_custom_call.1} parent=1 // pred_check_branch
      %97 = sbr.rel (0) target = $region21
    $region20: #{tpu_custom_call.1} parent=1 // pred_region
      %99 = vsyncadd [#allocation4], 0
      %s101 = sshll.u32 %s2, 4
      %s102 = int_to_ptr.hbm [resolvable:$true] %s101
      %104 = dma.smem_to_hbm [#allocation3], 16, %s102, [#allocation4]
    $region21: #{tpu_custom_call.1} parent=1 // pred_fallthru
      _
    // Predicated region
    $region22: #{tpu_custom_call.1} parent=1 // pred_check
      _
    $region23: #{tpu_custom_call.1} parent=1 // pred_check_branch
      %106 = sbr.rel (0) target = $region25
    $region24: #{tpu_custom_call.1} parent=1 // pred_region
      %108 = dma.done [#allocation4], 16
    $region25: #{tpu_custom_call.1} parent=1 // pred_fallthru
      _
    %109 = sfence
    %110 = vsyncpa [#allocation4], 1

</llo_original>
